<compile_context>
chip_gen: v7x
topology: tpu7x:2x2x1
jax: 0.10.0
libtpu: 0.0.40
codegen_flags: <defaults>
</compile_context>

<pallas_src>
import jax
import jax.numpy as jnp
from jax.experimental import pallas as pl
from jax.experimental.pallas import tpu as pltpu

# ----------------------------- module config --------------------------------
IN_CHANNELS = 4
OUT_CHANNELS = 8
SPLINE_ORDER = 3
KERNEL_SIZE = 3
STRIDE = 1
PADDING = 1
DILATION = 1
GROUPS = 2
NDIM = 2
KACN_EPS = 1e-7
BN_EPS = 1e-5

CIN_G = IN_CHANNELS // GROUPS                       # 2
COUT_G = OUT_CHANNELS // GROUPS                     # 4
CEXP = (SPLINE_ORDER + 1) * CIN_G                   # 8  (conv in-channels per group)
K2 = KERNEL_SIZE * KERNEL_SIZE                      # 9
FEAT_ROWS = (SPLINE_ORDER + 1) * IN_CHANNELS        # 16 (basis rows: s*IN_CHANNELS + c)
PATCH_ROWS = K2 * FEAT_ROWS                         # 144 (matmul contraction dim)


# ----------------------- pltpu.roll direction probe --------------------------
_ROLL_SIGN = None


def _roll_sign():
    """+1 if pltpu.roll matches np.roll (out[i] = in[(i - shift) % n]), else -1."""
    global _ROLL_SIGN
    if _ROLL_SIGN is None:
        def probe(x_ref, o_ref):
            o_ref[...] = pltpu.roll(x_ref[...], 1, axis=1)

        with jax.ensure_compile_time_eval():
            x = jnp.tile(jnp.arange(128, dtype=jnp.float32)[None, :], (8, 1))
            out = pl.pallas_call(
                probe, out_shape=jax.ShapeDtypeStruct((8, 128), jnp.float32))(x)
            first = float(out[0, 0])
        _ROLL_SIGN = 1 if first == 127.0 else -1
    return _ROLL_SIGN


# ------------------------------ fused kernel ---------------------------------
def _make_fused_kernel(n, h, w, roll_sign):
    hw = h * w
    nt = n * hw
    taps = [(kh * DILATION - PADDING, kw * DILATION - PADDING)
            for kh in range(KERNEL_SIZE) for kw in range(KERNEL_SIZE)]

    def kernel(x_ref, w_ref, mask_ref, gamma_ref, beta_ref, o_ref, p_ref):
        # x_ref:    (IN_CHANNELS, nt) f32, col = b*hw + p, row = g*CIN_G + ci
        # w_ref:    (OUT_CHANNELS, PATCH_ROWS) bf16, block-diagonal over groups
        # mask_ref: (K2, nt) f32, 1.0 where the tap reads inside the image
        # gamma_ref/beta_ref: (OUT_CHANNELS, 1) f32 (BN affine, shared across groups)
        # o_ref:    (OUT_CHANNELS, nt) f32
        # p_ref:    (PATCH_ROWS, nt) bf16 VMEM scratch (im2col patches)

        # 1) KACN basis on the whole block: tanh -> clamp -> Chebyshev T_0..T_S
        #    (identical to cos(s*acos(x)) on [-1, 1]).
        t = jnp.clip(jnp.tanh(x_ref[...]), -1.0 + KACN_EPS, 1.0 - KACN_EPS)
        cheb = [jnp.ones_like(t), t]
        for _ in range(2, SPLINE_ORDER + 1):
            cheb.append(2.0 * t * cheb[-1] - cheb[-2])
        feat = jnp.concatenate(cheb[:SPLINE_ORDER + 1], axis=0)   # (FEAT_ROWS, nt)

        # 2) in-VMEM im2col: lane rotate (XLU) + precomputed boundary mask,
        #    streamed straight into the bf16 patch scratch (bounds live ranges).
        for k, (dh, dw) in enumerate(taps):
            delta = dh * w + dw
            if delta == 0:
                shifted = feat
            else:
                amt = (-delta if roll_sign > 0 else delta) % nt
                shifted = pltpu.roll(feat, amt, axis=1)
            if dh != 0 or dw != 0:
                shifted = shifted * mask_ref[k:k + 1, :]          # zero the padding taps
            p_ref[k * FEAT_ROWS:(k + 1) * FEAT_ROWS, :] = shifted.astype(jnp.bfloat16)

        # 3) one block-diagonal MXU matmul: both groups, all taps, all batch lanes.
        y = jnp.dot(w_ref[...], p_ref[...], preferred_element_type=jnp.float32)

        # 4) BatchNorm epilogue (training-mode batch stats, biased variance);
        #    per output row == per (group, channel); single unmasked dense store.
        inv = 1.0 / nt
        m = jnp.sum(y, axis=1, keepdims=True) * inv
        d = y - m
        v = jnp.sum(d * d, axis=1, keepdims=True) * inv
        o_ref[...] = d * jax.lax.rsqrt(v + BN_EPS) * gamma_ref[...] + beta_ref[...]

    return kernel


# ------------------------------ wrapper helpers -------------------------------
def _block_diag_weight(weight):
    """(COUT_G, CEXP, K, K) shared weight -> bf16 (OUT_CHANNELS, PATCH_ROWS) block-diag."""
    w5 = weight.reshape(COUT_G, CIN_G, SPLINE_ORDER + 1, KERNEL_SIZE, KERNEL_SIZE)
    w5 = jnp.transpose(w5, (0, 3, 4, 2, 1))             # (co, kh, kw, s, ci)
    blocks = []
    for g in range(GROUPS):
        wg = jnp.pad(w5, ((0, 0), (0, 0), (0, 0), (0, 0),
                          (g * CIN_G, IN_CHANNELS - (g + 1) * CIN_G)))
        blocks.append(wg.reshape(COUT_G, PATCH_ROWS))    # col = ((kh*K+kw)*(S+1)+s)*C + c
    return jnp.concatenate(blocks, axis=0).astype(jnp.bfloat16)


def _boundary_masks(n, h, w):
    pos = jnp.arange(h * w, dtype=jnp.int32)
    oh, ow = pos // w, pos % w
    rows = []
    for kh in range(KERNEL_SIZE):
        for kw in range(KERNEL_SIZE):
            dh = kh * DILATION - PADDING
            dw = kw * DILATION - PADDING
            rows.append((oh + dh >= 0) & (oh + dh < h) & (ow + dw >= 0) & (ow + dw < w))
    m = jnp.stack(rows, axis=0).astype(jnp.float32)      # (K2, h*w)
    return jnp.tile(m, (1, n))                           # (K2, n*h*w), col = b*hw + p


# ------------------------------ forward wrapper --------------------------------
def kacn_forward(x, weight, gamma, beta):
    """x: (N, IN_CHANNELS, H, W) NCHW.  weight: (COUT_G, CEXP, K, K) shared by groups."""
    n, cin, h, w = x.shape
    assert cin == IN_CHANNELS
    nt = n * h * w

    # Layout work stays in the wrapper (cheap XLA transposes on tiny arrays).
    x2d = jnp.transpose(x, (1, 0, 2, 3)).reshape(IN_CHANNELS, nt)     # col = b*hw + p
    w_bd = _block_diag_weight(weight)                                 # bf16 MXU operand
    masks = _boundary_masks(n, h, w)
    gamma8 = jnp.tile(gamma, GROUPS).reshape(OUT_CHANNELS, 1).astype(jnp.float32)
    beta8 = jnp.tile(beta, GROUPS).reshape(OUT_CHANNELS, 1).astype(jnp.float32)

    out2d = pl.pallas_call(
        _make_fused_kernel(n, h, w, _roll_sign()),
        out_shape=jax.ShapeDtypeStruct((OUT_CHANNELS, nt), jnp.float32),
        scratch_shapes=[pltpu.VMEM((PATCH_ROWS, nt), jnp.bfloat16)],
    )(x2d, w_bd, masks, gamma8, beta8)

    # (C, N*H*W) -> NCHW; output row = g*COUT_G + co matches the reference concat order.
    return jnp.transpose(out2d.reshape(OUT_CHANNELS, n, h, w), (1, 0, 2, 3))


# --------------------------- pure-JAX reference ------------------------------
def reference_forward(x, weight, gamma, beta):
    n, _, h, w = x.shape
    ar = jnp.arange(SPLINE_ORDER + 1, dtype=x.dtype).reshape(1, 1, -1, 1, 1)
    outs = []
    for g in range(GROUPS):
        xg = x[:, g * CIN_G:(g + 1) * CIN_G]
        t = jnp.clip(jnp.tanh(xg), -1.0 + KACN_EPS, 1.0 - KACN_EPS)
        a = jnp.arccos(t)[:, :, None]                        # (N, CIN_G, 1, H, W)
        f = jnp.cos(a * ar).reshape(n, CEXP, h, w)
        y = jax.lax.conv_general_dilated(
            f, weight, window_strides=(STRIDE, STRIDE),
            padding=((PADDING, PADDING), (PADDING, PADDING)),
            rhs_dilation=(DILATION, DILATION),
            dimension_numbers=("NCHW", "OIHW", "NCHW"),
            precision=jax.lax.Precision.HIGHEST)
        m = jnp.mean(y, axis=(0, 2, 3), keepdims=True)
        v = jnp.mean((y - m) ** 2, axis=(0, 2, 3), keepdims=True)
        y = (y - m) * jax.lax.rsqrt(v + BN_EPS) * gamma.reshape(1, -1, 1, 1) \
            + beta.reshape(1, -1, 1, 1)
        outs.append(y)
    return jnp.concatenate(outs, axis=1)


# ----------------------------------- main ------------------------------------
if __name__ == "__main__":
    key = jax.random.PRNGKey(0)
    kx, kw = jax.random.split(key)

    x = jax.random.normal(kx, (2, IN_CHANNELS, 16, 16), dtype=jnp.float32)

    # nn.init.normal_(weight, mean=0, std=1/(in_ch*(S+1)*(mean(kernel_size))**ndim))
    std = 1.0 / (IN_CHANNELS * (SPLINE_ORDER + 1) * float(KERNEL_SIZE) ** NDIM)
    weight = std * jax.random.normal(kw, (COUT_G, CEXP, KERNEL_SIZE, KERNEL_SIZE),
                                     dtype=jnp.float32)
    gamma = jnp.ones((COUT_G,), jnp.float32)   # BatchNorm2d affine init
    beta = jnp.zeros((COUT_G,), jnp.float32)

    _roll_sign()   # resolve pltpu.roll rotation direction once, outside jit

    out = jax.jit(kacn_forward)(x, weight, gamma, beta)
    out = jax.block_until_ready(out)
    assert out.shape == (2, OUT_CHANNELS, 16, 16), out.shape

    ref = reference_forward(x, weight, gamma, beta)
    err = float(jnp.max(jnp.abs(out - ref)))
    # bf16 MXU operands + BatchNorm's 1/std scaling -> allow a few % of one std-dev.
    assert err < 3e-2, f"max abs err vs reference: {err}"

    print("KERNEL_OK")
</pallas_src>

<mosaic_0001>
module attributes {stable_mosaic.version = 11 : i64} {
  func.func @probe(%arg0: memref<8x128xf32, #tpu.memory_space<vmem>>, %arg1: memref<8x128xf32, #tpu.memory_space<vmem>>) attributes {dimension_semantics = [], scalar_prefetch = 0 : i64, scratch_operands = 0 : i64, tpu.core_type = #tpu.core_type<tc>} {
    %c0 = arith.constant 0 : index
    %c0_0 = arith.constant 0 : index
    %0 = vector.load %arg0[%c0, %c0_0] : memref<8x128xf32, #tpu.memory_space<vmem>>, vector<8x128xf32>
    %c1_i32 = arith.constant 1 : i32
    %1 = tpu.dynamic_rotate %0 by %c1_i32 dim 1 : vector<8x128xf32>, i32 -> vector<8x128xf32>
    %c0_1 = arith.constant 0 : index
    %c0_2 = arith.constant 0 : index
    %2 = vector.load %arg1[%c0_1, %c0_2] : memref<8x128xf32, #tpu.memory_space<vmem>>, vector<8x128xf32>
    tpu.vector_store %arg1[%c0_1, %c0_2], %1 {strides = array<i32>} : memref<8x128xf32, #tpu.memory_space<vmem>>, vector<8x128xf32>,
    return
  }
}

</mosaic_0001>

<llo_original>
// kernel: tpu_custom_call.1
$region0: #{tpu_custom_call.1}
  #allocation0 [shape = 'u32[]', space=smem, size = 0x4, offset = 0x4, fixed_abs, tag = 'smem constant byte address 0x4 - core index']
  #allocation1 [shape = 'u32[144,128]{1,0:T(1,128)}', space=vmem, size = 0x12000, scoped, tag = 'internal scratch']
  %s0 = inlined_call_operand.hbm [shape: f32[8,128], index: 0, kind: input, shape index: {}]
  %s1 = inlined_call_operand.hbm [shape: f32[8,128], index: 1, kind: output, shape index: {}]
  %s2 = sld [smem:[#allocation0]]
  $region18: #{tpu_custom_call.1} parent=0
    _
  %s4 = ssub.s32 1, %s2
  %s5 = scalar_select 0, %s4, %s2
  $region1: #{tpu_custom_call.1} parent=0
    #allocation2 [shape = 'u8[4096]{0}', space=vmem, size = 0x1000, scoped, tag = 'input window, operand 0, single buffered']
    #allocation3 [shape = 's32[1]{0}', space=sflag, size = 0x4, scoped, tag = 'scoped memory for tpu_custom_call.1']
    #allocation4 [shape = 's32[1]{0}', space=sflag, size = 0x4, scoped, tag = 'scoped memory for tpu_custom_call.1']
    #allocation5 [shape = 'u8[4096]{0}', space=vmem, size = 0x1000, scoped, tag = 'output window, operand 0, single buffered']
    %6 = vsyncpa [#allocation3], 0
    %7 = vsyncpa [#allocation4], 0
    // Predicated region
    $region2: #{tpu_custom_call.1} parent=1 // pred_check
      _
    $region3: #{tpu_custom_call.1} parent=1 // pred_check_branch
      %9 = sbr.rel (0) target = $region5
    $region4: #{tpu_custom_call.1} parent=1 // pred_region
      %s11 = ssub.s32 128, 128
      %12 = vsyncadd [#allocation3], %s11
      %s14 = sshll.u32 [#allocation2], 4
      %s15 = int_to_ptr.vmem [resolvable:$true] %s14
      %17 = dma.hbm_to_vmem [thread:$0]  %s0, 128, %s15, [#allocation3]
    $region5: #{tpu_custom_call.1} parent=1 // pred_fallthru
      _
    // Predicated region
    $region6: #{tpu_custom_call.1} parent=1 // pred_check
      _
    $region7: #{tpu_custom_call.1} parent=1 // pred_check_branch
      %19 = sbr.rel (0) target = $region9
    $region8: #{tpu_custom_call.1} parent=1 // pred_region
      %20 = dma.done [#allocation3], 128
    $region9: #{tpu_custom_call.1} parent=1 // pred_fallthru
      _
    %v21 = vld [vmem:[#allocation2] sm:$0xff]
    %22 = vrot.lane.b32.xlu0 %v21, 1
    %v23 = vpop.permute.xlu0 %22
    %24 = vst [vmem:[#allocation5] sm:$0xff] %v23
    // Predicated region
    $region10: #{tpu_custom_call.1} parent=1 // pred_check
      _
    $region11: #{tpu_custom_call.1} parent=1 // pred_check_branch
      %26 = sbr.rel (0) target = $region13
    $region12: #{tpu_custom_call.1} parent=1 // pred_region
      %s28 = ssub.s32 128, 128
      %29 = vsyncadd [#allocation4], %s28
      %s31 = sshll.u32 [#allocation5], 4
      %s32 = int_to_ptr.vmem [resolvable:$true] %s31
      %34 = dma.vmem_to_hbm [thread:$0]  %s32, 128, %s1, [#allocation4]
    $region13: #{tpu_custom_call.1} parent=1 // pred_fallthru
      _
    // Predicated region
    $region14: #{tpu_custom_call.1} parent=1 // pred_check
      _
    $region15: #{tpu_custom_call.1} parent=1 // pred_check_branch
      %36 = sbr.rel (0) target = $region17
    $region16: #{tpu_custom_call.1} parent=1 // pred_region
      %37 = dma.done [#allocation4], 128
    $region17: #{tpu_custom_call.1} parent=1 // pred_fallthru
      _
    %38 = vsyncpa [#allocation3], 1
    %39 = vsyncpa [#allocation4], 1

</llo_original>
